<compile_context>
chip_gen: v7x
topology: tpu7x:2x2x1
jax: 0.10.0
libtpu: 0.0.40
codegen_flags: <defaults>
</compile_context>

<pallas_src>
import jax
import jax.numpy as jnp
from jax.experimental import pallas as pl
from jax.experimental.pallas import tpu as pltpu


_RESIDENT_BUDGET = 24 * 1024 * 1024     # per-step VMEM footprint budget for the
                                        # weight-resident path (safe on all gens)


def _round_up(v, m):
    return (v + m - 1) // m * m


# ---------------------------------------------------------------------------
# Kernels
# ---------------------------------------------------------------------------

def _cg_resident_kernel(x_ref, xg_ref, wt_ref, b_ref, o_ref):
    """Weight-resident path: full K in one MXU sweep, no accumulator scratch.

    x_ref : (tm, Dp)  x LHS row block, already in the weight/compute dtype
    xg_ref: (tm, tn)  gate operand tile of x (original dtype)
    wt_ref: (Dp, tn)  W.T column block (resident across the batch sweep)
    b_ref : (1, tn)   bias tile
    o_ref : (tm, tn)  output tile
    """
    acc = jnp.dot(x_ref[...], wt_ref[...], preferred_element_type=jnp.float32)
    x1 = acc + b_ref[...].astype(jnp.float32)
    gate = jax.nn.sigmoid(x1)                       # EUP exp rides a free slot
    o_ref[...] = (xg_ref[...].astype(jnp.float32) * gate).astype(o_ref.dtype)


def _cg_reduce_kernel(x_ref, xg_ref, wt_ref, b_ref, o_ref, acc_ref):
    """Reduction-grid fallback (large D): K runs over grid axis 2.

    x_ref : (tm, tk)  x LHS tile, already in the weight/compute dtype
    xg_ref: (tm, tn)  gate operand tile of x
    wt_ref: (tk, tn)  W.T tile
    b_ref : (1, tn)   bias tile
    o_ref : (tm, tn)  output tile
    acc_ref: (tm, tn) f32 accumulator scratch (persists across K steps)
    """
    k = pl.program_id(2)
    partial = jnp.dot(x_ref[...], wt_ref[...], preferred_element_type=jnp.float32)

    @pl.when(k == 0)
    def _first():
        acc_ref[...] = partial          # direct write: no zero-init + RMW on step 0

    @pl.when(k > 0)
    def _accum():
        acc_ref[...] += partial

    @pl.when(k == pl.num_programs(2) - 1)
    def _finalize():
        x1 = acc_ref[...] + b_ref[...].astype(jnp.float32)
        gate = jax.nn.sigmoid(x1)
        o_ref[...] = (xg_ref[...].astype(jnp.float32) * gate).astype(o_ref.dtype)


# ---------------------------------------------------------------------------
# Parameter preparation (done once, off the hot path)
# ---------------------------------------------------------------------------

def prepare_params(w, b, compute_dtype=jnp.bfloat16):
    """Pre-transpose, pre-cast AND pre-pad the Linear weight/bias once.

    w: (D, D) PyTorch nn.Linear layout -> wt: (Dp, Dp) = pad(W.T) in compute_dtype.
    b: (D,) -> b2: (1, Dp) f32 (added to the f32 accumulator).
    On v5e always use a bf16 compute_dtype (f32 MXU there is a multi-pass
    decomposition and doubles weight HBM bytes).
    """
    w = jnp.asarray(w)
    b = jnp.asarray(b)
    d_out, d_in = w.shape
    assert d_out == d_in, "Context_Gating uses a square Linear"
    dp = _round_up(d_in, 128)

    wt = w.T.astype(compute_dtype)
    if dp != d_in:
        wt = jnp.pad(wt, ((0, dp - d_in), (0, dp - d_out)))

    b2 = b.reshape(1, -1).astype(jnp.float32)
    if dp != d_out:
        b2 = jnp.pad(b2, ((0, 0), (0, dp - d_out)))
    return wt, b2


# ---------------------------------------------------------------------------
# Tiling heuristics
# ---------------------------------------------------------------------------

def _pick_feat_tile(dp, requested, cap=512):
    """Largest multiple of 128 that divides dp (itself a 128-multiple), <= cap.
    Prefers multiples of 256 (native v6e/v7x 256x256 MXU tiles)."""
    if requested is not None:
        assert requested % 128 == 0 and dp % requested == 0, (
            "feature tile must be a multiple of 128 that divides the padded dim")
        return requested
    best128, best256 = 128, 0
    t = 128
    while t <= min(dp, cap):
        if dp % t == 0:
            best128 = t
            if t % 256 == 0:
                best256 = t
        t += 128
    if best256 >= 256:
        return best256
    if best128 == 128 and dp <= 1024:
        return dp          # one wide tile beats many narrow 128-wide grid steps
    return best128


def _resident_footprint(tm, tn, dp, lhs_b, x_b, w_b, out_b):
    # everything double-buffered by the automatic pipeline
    return 2 * (tm * dp * lhs_b        # x LHS row block
                + tm * tn * x_b        # gate operand tile
                + dp * tn * w_b        # resident W.T column block
                + tn * 4               # bias tile
                + tm * tn * out_b)     # output tile


def _reduce_footprint(tm, tn, tk, lhs_b, x_b, w_b, out_b):
    return (2 * (tm * tk * lhs_b + tm * tn * x_b + tk * tn * w_b
                 + tn * 4 + tm * tn * out_b)
            + tm * tn * 4)             # f32 accumulator scratch (single-buffered)


# ---------------------------------------------------------------------------
# Wrapper
# ---------------------------------------------------------------------------

def context_gating(x, wt, b2, *, tm=None, tn=None, tk=None, vmem_limit_bytes=None):
    """x: (B, D); wt: (Dp, Dp) pre-transposed/padded weight; b2: (1, Dp) f32."""
    B, D = x.shape
    Dp = wt.shape[1]
    assert wt.shape == (Dp, Dp), "wt must come from prepare_params (square, padded)"
    assert Dp % 128 == 0 and Dp >= D
    assert b2.shape == (1, Dp)

    x_b = jnp.dtype(x.dtype).itemsize
    w_b = jnp.dtype(wt.dtype).itemsize

    tn = _pick_feat_tile(Dp, tn)

    if tm is None:
        tm = min(_round_up(B, 8), 512)
    else:
        assert tm % 8 == 0, "tm must be a multiple of 8 (sublane constraint)"

    # Path choice: weight-resident (no K axis) when the per-step footprint fits.
    if tk is None:
        resident = _resident_footprint(tm, tn, Dp, w_b, x_b, w_b, x_b) <= _RESIDENT_BUDGET
        tk_eff = Dp if resident else _pick_feat_tile(Dp, None)
    else:
        tk_eff = _pick_feat_tile(Dp, tk)
        resident = (tk_eff == Dp)

    # v7x dual-TC: guarantee >= 2 blocks along a "parallel" axis when possible.
    Bp = _round_up(B, tm)
    if Bp // tm == 1 and Dp // tn == 1 and tm >= 16:
        tm = _round_up(tm // 2, 8)
        Bp = _round_up(B, tm)

    # Pad x only (weight/bias already padded once in prepare_params). Zero
    # rows/cols contribute nothing to the dot and are sliced off the output.
    xp = x if (Bp, Dp) == (B, D) else jnp.pad(x, ((0, Bp - B), (0, Dp - D)))
    # LHS copy pre-cast to the weight/compute dtype once per call (no per-step
    # in-kernel cast; halves LHS HBM traffic on the bf16 path).
    x_lhs = xp if xp.dtype == wt.dtype else xp.astype(wt.dtype)
    lhs_b = jnp.dtype(x_lhs.dtype).itemsize

    nI = Bp // tm
    nJ = Dp // tn

    if resident:
        footprint = _resident_footprint(tm, tn, Dp, lhs_b, x_b, w_b, x_b)
        # j outer, i inner: the W.T column block index is constant across the
        # batch sweep -> DMA'd once per j instead of once per (i, j).
        grid = (nJ, nI)
        grid_spec = pltpu.PrefetchScalarGridSpec(
            num_scalar_prefetch=0,
            grid=grid,
            in_specs=[
                pl.BlockSpec((tm, Dp), lambda j, i: (i, 0)),   # x LHS (compute dtype)
                pl.BlockSpec((tm, tn), lambda j, i: (i, j)),   # x gate operand
                pl.BlockSpec((Dp, tn), lambda j, i: (0, j)),   # W.T column block (resident)
                pl.BlockSpec((1, tn), lambda j, i: (0, j)),    # bias tile
            ],
            out_specs=pl.BlockSpec((tm, tn), lambda j, i: (i, j)),
        )
        kernel = _cg_resident_kernel
        dims = ("parallel", "parallel")
    else:
        footprint = _reduce_footprint(tm, tn, tk_eff, lhs_b, x_b, w_b, x_b)
        grid = (nI, nJ, Dp // tk_eff)
        grid_spec = pltpu.PrefetchScalarGridSpec(
            num_scalar_prefetch=0,
            grid=grid,
            in_specs=[
                pl.BlockSpec((tm, tk_eff), lambda i, j, k: (i, k)),   # x LHS
                pl.BlockSpec((tm, tn), lambda i, j, k: (i, j)),       # x gate operand
                pl.BlockSpec((tk_eff, tn), lambda i, j, k: (k, j)),   # W.T tile
                pl.BlockSpec((1, tn), lambda i, j, k: (0, j)),        # bias tile
            ],
            out_specs=pl.BlockSpec((tm, tn), lambda i, j, k: (i, j)),
            scratch_shapes=[pltpu.VMEM((tm, tn), jnp.float32)],
        )
        kernel = _cg_reduce_kernel
        dims = ("parallel", "parallel", "arbitrary")

    if vmem_limit_bytes is None:
        need = footprint + footprint // 4 + (2 << 20)   # 25% + 2 MiB headroom
        if need > 30 * 1024 * 1024:                     # only raise past the default
            vmem_limit_bytes = int(min(need, 48 * 1024 * 1024))  # < 64 MiB v7x VMEM

    out = pl.pallas_call(
        kernel,
        out_shape=jax.ShapeDtypeStruct((Bp, Dp), x.dtype),
        grid_spec=grid_spec,
        compiler_params=pltpu.CompilerParams(
            dimension_semantics=dims,
            vmem_limit_bytes=vmem_limit_bytes,
        ),
    )(x_lhs, xp, wt, b2)

    if (Bp, Dp) != (B, D):
        out = out[:B, :D]
    return out


# ---------------------------------------------------------------------------
# Reference + tests
# ---------------------------------------------------------------------------

def context_gating_ref(x, w, b):
    x1 = x @ w.T + b
    return x * jax.nn.sigmoid(x1)


if __name__ == "__main__":
    key = jax.random.PRNGKey(0)
    k_x, k_w, k_b, k_x2, k_w2, k_b2 = jax.random.split(key, 6)

    # --- case 1: small tile-friendly shapes, f32 path, weight-resident ------
    B, D = 8, 128
    bound = 1.0 / (D ** 0.5)
    x = jax.random.normal(k_x, (B, D), dtype=jnp.float32)
    w = jax.random.uniform(k_w, (D, D), minval=-bound, maxval=bound, dtype=jnp.float32)
    b = jax.random.uniform(k_b, (D,), minval=-bound, maxval=bound, dtype=jnp.float32)

    wt_f32, b2 = prepare_params(w, b, compute_dtype=jnp.float32)
    out = jax.block_until_ready(context_gating(x, wt_f32, b2))
    ref = context_gating_ref(x, w, b)
    assert out.shape == (B, D)
    assert jnp.allclose(out, ref, atol=1e-5, rtol=1e-5), "f32 resident path mismatch"

    # --- case 2: bf16 MXU path + ragged batch + non-128-multiple-of-256 D ---
    B2, D2 = 20, 384
    bound2 = 1.0 / (D2 ** 0.5)
    x2 = jax.random.normal(k_x2, (B2, D2), dtype=jnp.float32)
    w2 = jax.random.uniform(k_w2, (D2, D2), minval=-bound2, maxval=bound2, dtype=jnp.float32)
    bv2 = jax.random.uniform(k_b2, (D2,), minval=-bound2, maxval=bound2, dtype=jnp.float32)

    wt_bf16, b2_2 = prepare_params(w2, bv2, compute_dtype=jnp.bfloat16)
    out2 = jax.block_until_ready(context_gating(x2, wt_bf16, b2_2))
    ref2 = context_gating_ref(x2, w2, bv2)
    assert out2.shape == (B2, D2)
    assert jnp.allclose(out2, ref2, atol=5e-2, rtol=5e-2), "bf16 resident path mismatch"

    # --- case 3: force the 3-D reduction-grid fallback (tk < Dp) -------------
    out3 = jax.block_until_ready(context_gating(x2, wt_bf16, b2_2, tk=128))
    assert out3.shape == (B2, D2)
    assert jnp.allclose(out3, ref2, atol=5e-2, rtol=5e-2), "reduction path mismatch"

    print("KERNEL_OK")
</pallas_src>

<mosaic_0001>
module attributes {stable_mosaic.version = 11 : i64} {
  func.func @_cg_resident_kernel(%arg0: i32, %arg1: i32, %arg2: memref<8x128xf32, #tpu.memory_space<vmem>>, %arg3: memref<8x128xf32, #tpu.memory_space<vmem>>, %arg4: memref<128x128xf32, #tpu.memory_space<vmem>>, %arg5: memref<1x128xf32, #tpu.memory_space<vmem>>, %arg6: memref<8x128xf32, #tpu.memory_space<vmem>>) attributes {dimension_semantics = [#tpu.dimension_semantics<parallel>, #tpu.dimension_semantics<parallel>], iteration_bounds = array<i64: 1, 1>, scalar_prefetch = 0 : i64, scratch_operands = 0 : i64, tpu.core_type = #tpu.core_type<tc>, window_params = [{transform_indices = @transform_0, window_bounds = array<i64: 8, 128>}, {transform_indices = @transform_1, window_bounds = array<i64: 8, 128>}, {transform_indices = @transform_2, window_bounds = array<i64: 128, 128>}, {transform_indices = @transform_3, window_bounds = array<i64: 1, 128>}, {transform_indices = @transform_4, window_bounds = array<i64: 8, 128>}]} {
    %c0 = arith.constant 0 : index
    %c0_0 = arith.constant 0 : index
    %0 = vector.load %arg2[%c0, %c0_0] : memref<8x128xf32, #tpu.memory_space<vmem>>, vector<8x128xf32>
    %c0_1 = arith.constant 0 : index
    %c0_2 = arith.constant 0 : index
    %1 = vector.load %arg4[%c0_1, %c0_2] : memref<128x128xf32, #tpu.memory_space<vmem>>, vector<128x128xf32>
    %cst = arith.constant dense<0.000000e+00> : vector<8x128xf32>
    %2 = tpu.matmul %0, %1, %cst {dimension_numbers = #tpu.dot_dimension_numbers<[1], [0], [0], [1], [0, 0, 1, 1], [], []>} : vector<8x128xf32>, vector<128x128xf32>, vector<8x128xf32> -> vector<8x128xf32>
    %c0_3 = arith.constant 0 : index
    %c0_4 = arith.constant 0 : index
    %3 = vector.load %arg5[%c0_3, %c0_4] : memref<1x128xf32, #tpu.memory_space<vmem>>, vector<1x128xf32>
    %4 = vector.broadcast %3 : vector<1x128xf32> to vector<8x128xf32>
    %5 = arith.addf %2, %4 : vector<8x128xf32>
    %6 = arith.negf %5 : vector<8x128xf32>
    %7 = math.exp %6 : vector<8x128xf32>
    %cst_5 = arith.constant 1.000000e+00 : f32
    %8 = vector.broadcast %cst_5 : f32 to vector<8x128xf32>
    %9 = arith.addf %8, %7 : vector<8x128xf32>
    %10 = arith.divf %8, %9 : vector<8x128xf32>
    %c0_6 = arith.constant 0 : index
    %c0_7 = arith.constant 0 : index
    %11 = vector.load %arg3[%c0_6, %c0_7] : memref<8x128xf32, #tpu.memory_space<vmem>>, vector<8x128xf32>
    %12 = arith.mulf %11, %10 : vector<8x128xf32>
    %c0_8 = arith.constant 0 : index
    %c0_9 = arith.constant 0 : index
    %13 = vector.load %arg6[%c0_8, %c0_9] : memref<8x128xf32, #tpu.memory_space<vmem>>, vector<8x128xf32>
    tpu.vector_store %arg6[%c0_8, %c0_9], %12 {strides = array<i32>} : memref<8x128xf32, #tpu.memory_space<vmem>>, vector<8x128xf32>,
    return
  }
  func.func @transform_0(%arg0: i32, %arg1: i32) -> (i32, i32) {
    %c0_i32 = arith.constant 0 : i32
    %c0_i32_0 = arith.constant 0 : i32
    return %arg1, %c0_i32 : i32, i32
  }
  func.func @transform_1(%arg0: i32, %arg1: i32) -> (i32, i32) {
    %c0_i32 = arith.constant 0 : i32
    return %arg1, %arg0 : i32, i32
  }
  func.func @transform_2(%arg0: i32, %arg1: i32) -> (i32, i32) {
    %c0_i32 = arith.constant 0 : i32
    %c0_i32_0 = arith.constant 0 : i32
    return %c0_i32, %arg0 : i32, i32
  }
  func.func @transform_3(%arg0: i32, %arg1: i32) -> (i32, i32) {
    %c0_i32 = arith.constant 0 : i32
    %c0_i32_0 = arith.constant 0 : i32
    return %c0_i32, %arg0 : i32, i32
  }
  func.func @transform_4(%arg0: i32, %arg1: i32) -> (i32, i32) {
    %c0_i32 = arith.constant 0 : i32
    return %arg1, %arg0 : i32, i32
  }
}

</mosaic_0001>

<llo_original>
// kernel: tpu_custom_call.1
$region0: #{tpu_custom_call.1}
  #allocation0 [shape = 'u32[]', space=smem, size = 0x4, offset = 0x4, fixed_abs, tag = 'smem constant byte address 0x4 - core index']
  #allocation1 [shape = 'u32[144,128]{1,0:T(1,128)}', space=vmem, size = 0x12000, scoped, tag = 'internal scratch']
  %s0 = inlined_call_operand.hbm [shape: f32[8,128], index: 0, kind: input, shape index: {}]
  %s1 = inlined_call_operand.hbm [shape: f32[8,128], index: 1, kind: input, shape index: {}]
  %s2 = inlined_call_operand.hbm [shape: f32[128,128], index: 2, kind: input, shape index: {}]
  %s3 = inlined_call_operand.vmem [shape: f32[1,128], index: 3, kind: input, shape index: {}]
  %s4 = inlined_call_operand.hbm [shape: f32[8,128], index: 4, kind: output, shape index: {}]
  %s5 = sld [smem:[#allocation0]]
  $region38: #{tpu_custom_call.1} parent=0
    _
  %s7 = ssub.s32 1, %s5
  %s8 = scalar_select 0, %s7, %s5
  $region1: #{tpu_custom_call.1} parent=0
    #allocation2 [shape = 'u8[4096]{0}', space=vmem, size = 0x1000, scoped, tag = 'input window, operand 0, single buffered']
    #allocation3 [shape = 's32[1]{0}', space=sflag, size = 0x4, scoped, tag = 'scoped memory for tpu_custom_call.1']
    #allocation4 [shape = 's32[1]{0}', space=sflag, size = 0x4, scoped, tag = 'scoped memory for tpu_custom_call.1']
    #allocation5 [shape = 'u8[4096]{0}', space=vmem, size = 0x1000, scoped, tag = 'input window, operand 1, single buffered']
    #allocation6 [shape = 's32[1]{0}', space=sflag, size = 0x4, scoped, tag = 'scoped memory for tpu_custom_call.1']
    #allocation7 [shape = 'u8[65536]{0}', space=vmem, size = 0x10000, scoped, tag = 'input window, operand 2, single buffered']
    #allocation8 [shape = 'u8[4096]{0}', space=vmem, size = 0x1000, scoped, tag = 'output window, operand 0, single buffered']
    %9 = vsyncpa [#allocation3], 0
    %10 = vsyncpa [#allocation6], 0
    %11 = vsyncpa [#allocation4], 0
    // Predicated region
    $region2: #{tpu_custom_call.1} parent=1 // pred_check
      _
    $region3: #{tpu_custom_call.1} parent=1 // pred_check_branch
      %13 = sbr.rel (0) target = $region5
    $region4: #{tpu_custom_call.1} parent=1 // pred_region
      %s15 = ssub.s32 128, 128
      %16 = vsyncadd [#allocation3], %s15
      %s18 = sshll.u32 [#allocation2], 4
      %s19 = int_to_ptr.vmem [resolvable:$true] %s18
      %21 = dma.hbm_to_vmem [thread:$0]  %s0, 128, %s19, [#allocation3]
    $region5: #{tpu_custom_call.1} parent=1 // pred_fallthru
      _
    // Predicated region
    $region6: #{tpu_custom_call.1} parent=1 // pred_check
      _
    $region7: #{tpu_custom_call.1} parent=1 // pred_check_branch
      %23 = sbr.rel (0) target = $region9
    $region8: #{tpu_custom_call.1} parent=1 // pred_region
      %s25 = ssub.s32 128, 128
      %26 = vsyncadd [#allocation6], %s25
      %s28 = sshll.u32 [#allocation5], 4
      %s29 = int_to_ptr.vmem [resolvable:$true] %s28
      %31 = dma.hbm_to_vmem [thread:$0]  %s1, 128, %s29, [#allocation6]
    $region9: #{tpu_custom_call.1} parent=1 // pred_fallthru
      _
    // Predicated region
    $region10: #{tpu_custom_call.1} parent=1 // pred_check
      _
    $region11: #{tpu_custom_call.1} parent=1 // pred_check_branch
      %33 = sbr.rel (0) target = $region13
    $region12: #{tpu_custom_call.1} parent=1 // pred_region
      %s35 = ssub.s32 2048, 2048
      %36 = vsyncadd [#allocation6], %s35
      %s37 = sshll.u32 [#allocation7], 4
      %s38 = int_to_ptr.vmem [resolvable:$true] %s37
      %43 = dma.hbm_to_vmem [thread:$0]  %s2, 2048, %s38, [#allocation6], 128, 128, 8
    $region13: #{tpu_custom_call.1} parent=1 // pred_fallthru
      _
    // Predicated region
    $region14: #{tpu_custom_call.1} parent=1 // pred_check
      _
    $region15: #{tpu_custom_call.1} parent=1 // pred_check_branch
      %45 = sbr.rel (0) target = $region17
    $region16: #{tpu_custom_call.1} parent=1 // pred_region
      _
    $region17: #{tpu_custom_call.1} parent=1 // pred_fallthru
      _
    // Predicated region
    $region18: #{tpu_custom_call.1} parent=1 // pred_check
      _
    $region19: #{tpu_custom_call.1} parent=1 // pred_check_branch
      %47 = sbr.rel (0) target = $region21
    $region20: #{tpu_custom_call.1} parent=1 // pred_region
      %48 = dma.done [#allocation3], 128
    $region21: #{tpu_custom_call.1} parent=1 // pred_fallthru
      _
    // Predicated region
    $region22: #{tpu_custom_call.1} parent=1 // pred_check
      _
    $region23: #{tpu_custom_call.1} parent=1 // pred_check_branch
      %50 = sbr.rel (0) target = $region25
    $region24: #{tpu_custom_call.1} parent=1 // pred_region
      %51 = dma.done [#allocation6], 128
    $region25: #{tpu_custom_call.1} parent=1 // pred_fallthru
      _
    // Predicated region
    $region26: #{tpu_custom_call.1} parent=1 // pred_check
      _
    $region27: #{tpu_custom_call.1} parent=1 // pred_check_branch
      %53 = sbr.rel (0) target = $region29
    $region28: #{tpu_custom_call.1} parent=1 // pred_region
      %54 = dma.done [#allocation6], 2048
    $region29: #{tpu_custom_call.1} parent=1 // pred_fallthru
      _
    %v55 = vld [vmem:[#allocation2] sm:$0xff]
    %v56 = vld [vmem:[#allocation7] sm:$0xff]
    %v57 = vld [vmem:[#allocation7 + $0x8] sm:$0xff]
    %v58 = vld [vmem:[#allocation7 + $0x10] sm:$0xff]
    %v59 = vld [vmem:[#allocation7 + $0x18] sm:$0xff]
    %v60 = vld [vmem:[#allocation7 + $0x20] sm:$0xff]
    %v61 = vld [vmem:[#allocation7 + $0x28] sm:$0xff]
    %v62 = vld [vmem:[#allocation7 + $0x30] sm:$0xff]
    %v63 = vld [vmem:[#allocation7 + $0x38] sm:$0xff]
    %v64 = vld [vmem:[#allocation7 + $0x40] sm:$0xff]
    %v65 = vld [vmem:[#allocation7 + $0x48] sm:$0xff]
    %v66 = vld [vmem:[#allocation7 + $0x50] sm:$0xff]
    %v67 = vld [vmem:[#allocation7 + $0x58] sm:$0xff]
    %v68 = vld [vmem:[#allocation7 + $0x60] sm:$0xff]
    %v69 = vld [vmem:[#allocation7 + $0x68] sm:$0xff]
    %v70 = vld [vmem:[#allocation7 + $0x70] sm:$0xff]
    %v71 = vld [vmem:[#allocation7 + $0x78] sm:$0xff]
    %v72 = vld [vmem:[%s3] sm:$0x1]
    %v74 = vlaneseq
    %v75 = vshrl.u32 %v74, 7
    %v76 = vsub.s32 0, %v75
    %v77 = vrot.slane %v72, %v76
    %79 = vmatprep.subr.mxu0 0.0
    %80 = vmatpush1.msra.mxu0 %v56
    %81 = vmatprep.subr.mxu0 0.0
    %82 = vmatpush1.msra.mxu0 %v57
    %83 = vmatprep.subr.mxu0 0.0
    %84 = vmatpush1.msra.mxu0 %v58
    %85 = vmatprep.subr.mxu0 0.0
    %86 = vmatpush1.msra.mxu0 %v59
    %87 = vmatprep.subr.mxu0 0.0
    %88 = vmatpush1.msra.mxu0 %v60
    %89 = vmatprep.subr.mxu0 0.0
    %90 = vmatpush1.msra.mxu0 %v61
    %91 = vmatprep.subr.mxu0 0.0
    %92 = vmatpush1.msra.mxu0 %v62
    %93 = vmatprep.subr.mxu0 0.0
    %94 = vmatpush1.msra.mxu0 %v63
    %95 = vmatprep.subr.mxu0 0.0
    %96 = vmatpush1.msra.mxu0 %v64
    %97 = vmatprep.subr.mxu0 0.0
    %98 = vmatpush1.msra.mxu0 %v65
    %99 = vmatprep.subr.mxu0 0.0
    %100 = vmatpush1.msra.mxu0 %v66
    %101 = vmatprep.subr.mxu0 0.0
    %102 = vmatpush1.msra.mxu0 %v67
    %103 = vmatprep.subr.mxu0 0.0
    %104 = vmatpush1.msra.mxu0 %v68
    %105 = vmatprep.subr.mxu0 0.0
    %106 = vmatpush1.msra.mxu0 %v69
    %107 = vmatprep.subr.mxu0 0.0
    %108 = vmatpush1.msra.mxu0 %v70
    %109 = vmatprep.subr.mxu0 0.0
    %110 = vmatpush1.msra.mxu0 %v71
    %111 = vmatprep.subr.mxu0 0.0
    %112 = vmatpush1.msra.mxu0 0.0
    %113 = vmatprep.subr.mxu0 0.0
    %114 = vmatpush1.msra.mxu0 0.0
    %115 = vmatprep.subr.mxu0 0.0
    %116 = vmatpush1.msra.mxu0 0.0
    %117 = vmatprep.subr.mxu0 0.0
    %118 = vmatpush1.msra.mxu0 0.0
    %119 = vmatprep.subr.mxu0 0.0
    %120 = vmatpush1.msra.mxu0 0.0
    %121 = vmatprep.subr.mxu0 0.0
    %122 = vmatpush1.msra.mxu0 0.0
    %123 = vmatprep.subr.mxu0 0.0
    %124 = vmatpush1.msra.mxu0 0.0
    %125 = vmatprep.subr.mxu0 0.0
    %126 = vmatpush1.msra.mxu0 0.0
    %127 = vmatprep.subr.mxu0 0.0
    %128 = vmatpush1.msra.mxu0 0.0
    %129 = vmatprep.subr.mxu0 0.0
    %130 = vmatpush1.msra.mxu0 0.0
    %131 = vmatprep.subr.mxu0 0.0
    %132 = vmatpush1.msra.mxu0 0.0
    %133 = vmatprep.subr.mxu0 0.0
    %134 = vmatpush1.msra.mxu0 0.0
    %135 = vmatprep.subr.mxu0 0.0
    %136 = vmatpush1.msra.mxu0 0.0
    %137 = vmatprep.subr.mxu0 0.0
    %138 = vmatpush1.msra.mxu0 0.0
    %139 = vmatprep.subr.mxu0 0.0
    %140 = vmatpush1.msra.mxu0 0.0
    %141 = vmatprep.subr.mxu0 0.0
    %142 = vmatpush1.msra.mxu0 0.0
    %143 = vmatprep.mubr.f32.mxu0 0.0
    %144 = vmatmul.mubr.f32.gmra.mrb[0].mxu0 %v55
    %v145 = vpop.f32.mrb[0].mxu0
    %v146 = vadd.f32 %v77, %v145
    %v147 = vpop.f32.mrb[0].mxu0
    %148 = vdwg.mxu0
    %v149 = vxor.u32 %v146, 2147483648
    %v150 = vmul.f32 %v149, 1.442695
    %v151 = vpow.pop %v150
    %v152 = vadd.f32 %v151, 1.0
    %v153 = vrcp.pop %v152
    %v154 = vmul.f32 1.0, %v153
    %v155 = vld [vmem:[#allocation5] sm:$0xff]
    %v156 = vmul.f32 %v155, %v154
    %157 = vst [vmem:[#allocation8] sm:$0xff] %v156
    // Predicated region
    $region30: #{tpu_custom_call.1} parent=1 // pred_check
      _
    $region31: #{tpu_custom_call.1} parent=1 // pred_check_branch
      %159 = sbr.rel (0) target = $region33
    $region32: #{tpu_custom_call.1} parent=1 // pred_region
      %s161 = ssub.s32 128, 128
      %162 = vsyncadd [#allocation4], %s161
      %s164 = sshll.u32 [#allocation8], 4
      %s165 = int_to_ptr.vmem [resolvable:$true] %s164
      %167 = dma.vmem_to_hbm [thread:$0]  %s165, 128, %s4, [#allocation4]
    $region33: #{tpu_custom_call.1} parent=1 // pred_fallthru
      _
    // Predicated region
    $region34: #{tpu_custom_call.1} parent=1 // pred_check
      _
    $region35: #{tpu_custom_call.1} parent=1 // pred_check_branch
      %169 = sbr.rel (0) target = $region37
    $region36: #{tpu_custom_call.1} parent=1 // pred_region
      %170 = dma.done [#allocation4], 128
    $region37: #{tpu_custom_call.1} parent=1 // pred_fallthru
      _
    %171 = vsyncpa [#allocation3], 1
    %172 = vsyncpa [#allocation6], 1
    %173 = vsyncpa [#allocation4], 1

</llo_original>
